<compile_context>
chip_gen: v5e
topology: v5e:2x2
jax: 0.10.0
libtpu: 0.0.40
codegen_flags: <defaults>
</compile_context>

<pallas_src>
import math

import numpy as np
import jax
import jax.numpy as jnp
from jax.experimental import pallas as pl
from jax.experimental.pallas import tpu as pltpu


def _pe_add_kernel(xpos_ref, ypos_ref, ax_ref, ay_ref, ph_ref, x_ref, o_ref, pe_ref):
    # Recompute the PE tile only when the channel block changes: the batch
    # axis is the inner, sequential ("arbitrary") grid axis, so pe_ref stays
    # valid across all batch steps of the current channel block.
    @pl.when(pl.program_id(1) == 0)
    def _():
        arg = (xpos_ref[...] * ax_ref[...]      # (1,HW) * (CBLK,1) -> (CBLK,HW)
               + ypos_ref[...] * ay_ref[...]
               + ph_ref[...])                   # cos(t) == sin(t + pi/2)
        pe_ref[...] = jnp.sin(arg)

    o_ref[...] = (x_ref[...].astype(jnp.float32) + pe_ref[...]).astype(o_ref.dtype)


def _make_div_term(d_model, temp_bug_fix=True):
    ar = np.arange(0, d_model // 2, 2, dtype=np.float32)
    if temp_bug_fix:
        return np.exp(ar * (-math.log(10000.0) / (d_model // 2))).astype(np.float32)
    # original (buggy) LoFTR variant, kept intentionally for parity with the module
    return np.exp(ar * (-math.log(10000.0) / d_model // 2)).astype(np.float32)


def _choose_cblk(C, HW, itemsize=4, max_block_bytes=2 << 20):
    """Largest multiple-of-8 divisor of C whose (CBLK, HW) tile fits the budget.
    Prefers >= 2 channel blocks (keeps both v7x TensorCores fed) while staying
    well under the smallest default scoped-VMEM limit (v5e: 16 MiB)."""
    if C % 8 != 0:
        return C                      # only a full-C block satisfies (8,128) tiling
    divisors = [d for d in range(8, C + 1, 8) if C % d == 0]
    fit = [d for d in divisors if d * HW * itemsize <= max_block_bytes]
    multi = [d for d in fit if d < C]
    if multi:
        return max(multi)
    if fit:
        return max(fit)
    return min(divisors)


def position_encoding_sine(x, *, max_shape=(256, 256), temp_bug_fix=True, npe=False):
    """x: [N, C, H, W].  Returns x + PE[:, :, :H, :W] (LoFTR PositionEncodingSine)."""
    N, C, H, W = x.shape
    d_model = C
    assert d_model % 4 == 0
    assert H <= max_shape[0] and W <= max_shape[1]
    assert npe is not None

    if isinstance(npe, bool):
        train_h, train_w, test_h, test_w = (832, 832, 832, 832)
    else:
        train_h, train_w, test_h, test_w = npe
    y_scale = float(train_h) / float(test_h)
    x_scale = float(train_w) / float(test_w)

    HW = H * W
    itemsize = int(np.dtype(x.dtype).itemsize)
    CBLK = _choose_cblk(C, HW, itemsize=itemsize)
    CB = C // CBLK

    div_term = _make_div_term(d_model, temp_bug_fix)              # (C // 4,)

    # Per-channel constants (host precompute, shape-only):
    #   PE[c, p] = sin(xpos[p]*ax[c] + ypos[p]*ay[c] + phase[c])
    c = np.arange(C)
    g = c % 4                                                     # 0:sin(x) 1:cos(x) 2:sin(y) 3:cos(y)
    freq = div_term[c // 4].astype(np.float32)                    # (C,)
    use_x = (g < 2).astype(np.float32)
    ax = (use_x * freq).reshape(C, 1).astype(np.float32)
    ay = ((1.0 - use_x) * freq).reshape(C, 1).astype(np.float32)
    phase = ((g % 2).astype(np.float32) * (math.pi / 2)).reshape(C, 1).astype(np.float32)

    # Flat (lane-dense) 1-based positions.
    p = np.arange(HW)
    xpos = (((p % W) + 1).astype(np.float32) * x_scale).reshape(1, HW).astype(np.float32)
    ypos = (((p // W) + 1).astype(np.float32) * y_scale).reshape(1, HW).astype(np.float32)

    x_flat = x.reshape(N, C, HW)

    out_flat = pl.pallas_call(
        _pe_add_kernel,
        out_shape=jax.ShapeDtypeStruct((N, C, HW), x.dtype),
        grid=(CB, N),                                             # batch inner (PE scratch carried)
        in_specs=[
            pl.BlockSpec((1, HW), lambda cb, n: (0, 0)),          # xpos  (VMEM-resident)
            pl.BlockSpec((1, HW), lambda cb, n: (0, 0)),          # ypos  (VMEM-resident)
            pl.BlockSpec((CBLK, 1), lambda cb, n: (cb, 0)),       # ax
            pl.BlockSpec((CBLK, 1), lambda cb, n: (cb, 0)),       # ay
            pl.BlockSpec((CBLK, 1), lambda cb, n: (cb, 0)),       # phase
            pl.BlockSpec((None, CBLK, HW), lambda cb, n: (n, cb, 0)),   # x
        ],
        out_specs=pl.BlockSpec((None, CBLK, HW), lambda cb, n: (n, cb, 0)),
        scratch_shapes=[pltpu.VMEM((CBLK, HW), jnp.float32)],     # cached PE tile
        input_output_aliases={5: 0},                              # in-place x += PE
        compiler_params=pltpu.CompilerParams(
            dimension_semantics=("parallel", "arbitrary")),
        cost_estimate=pl.CostEstimate(
            flops=int((N + 6) * C * HW),
            transcendentals=int(C * HW),
            bytes_accessed=int(2 * N * C * HW * itemsize)),
    )(jnp.asarray(xpos), jnp.asarray(ypos), jnp.asarray(ax),
      jnp.asarray(ay), jnp.asarray(phase), x_flat)

    return out_flat.reshape(N, C, H, W)


def _reference(x, *, temp_bug_fix=True):
    """Pure-JAX reference mirroring the PyTorch __init__ + forward (default npe)."""
    N, C, H, W = x.shape
    div = jnp.asarray(_make_div_term(C, temp_bug_fix))[:, None, None]       # (C/4,1,1)
    x_pos = jnp.broadcast_to(
        jnp.arange(1, W + 1, dtype=jnp.float32)[None, :], (H, W))[None]     # (1,H,W)
    y_pos = jnp.broadcast_to(
        jnp.arange(1, H + 1, dtype=jnp.float32)[:, None], (H, W))[None]     # (1,H,W)
    pe = jnp.zeros((C, H, W), jnp.float32)
    pe = pe.at[0::4].set(jnp.sin(x_pos * div))
    pe = pe.at[1::4].set(jnp.cos(x_pos * div))
    pe = pe.at[2::4].set(jnp.sin(y_pos * div))
    pe = pe.at[3::4].set(jnp.cos(y_pos * div))
    return x + pe[None]


if __name__ == "__main__":
    key = jax.random.PRNGKey(0)
    N, C, H, W = 2, 8, 16, 16          # small shapes; C = d_model must be % 4 == 0
    x = jax.random.normal(key, (N, C, H, W), dtype=jnp.float32)

    ref = _reference(x)                 # computed first, before the aliased call

    out = position_encoding_sine(x)
    out = jax.block_until_ready(out)

    np.testing.assert_allclose(np.asarray(out), np.asarray(ref), rtol=1e-5, atol=1e-5)

    print("KERNEL_OK")
</pallas_src>

<mosaic_0001>
module attributes {stable_mosaic.version = 11 : i64} {
  func.func @_pe_add_kernel(%arg0: i32, %arg1: i32, %arg2: memref<1x256xf32, #tpu.memory_space<vmem>>, %arg3: memref<1x256xf32, #tpu.memory_space<vmem>>, %arg4: memref<8x1xf32, #tpu.memory_space<vmem>>, %arg5: memref<8x1xf32, #tpu.memory_space<vmem>>, %arg6: memref<8x1xf32, #tpu.memory_space<vmem>>, %arg7: memref<1x8x256xf32, #tpu.memory_space<vmem>>, %arg8: memref<1x8x256xf32, #tpu.memory_space<vmem>>, %arg9: memref<8x256xf32, #tpu.memory_space<vmem>>) attributes {dimension_semantics = [#tpu.dimension_semantics<parallel>, #tpu.dimension_semantics<arbitrary>], iteration_bounds = array<i64: 1, 2>, scalar_prefetch = 0 : i64, scratch_operands = 1 : i64, tpu.core_type = #tpu.core_type<tc>, window_params = [{pipeline_mode = #tpu.pipeline_mode<synchronous>, transform_indices = @transform_0, window_bounds = array<i64: 1, 256>}, {pipeline_mode = #tpu.pipeline_mode<synchronous>, transform_indices = @transform_1, window_bounds = array<i64: 1, 256>}, {transform_indices = @transform_2, window_bounds = array<i64: 8, 1>}, {transform_indices = @transform_3, window_bounds = array<i64: 8, 1>}, {transform_indices = @transform_4, window_bounds = array<i64: 8, 1>}, {transform_indices = @transform_5, window_bounds = array<i64: 1, 8, 256>}, {transform_indices = @transform_6, window_bounds = array<i64: 1, 8, 256>}]} {
    %c0_i32 = arith.constant 0 : i32
    %0 = arith.cmpi eq, %arg1, %c0_i32 : i32
    %1 = arith.extui %0 : i1 to i32
    %c0_i32_0 = arith.constant 0 : i32
    %2 = arith.cmpi ne, %1, %c0_i32_0 : i32
    scf.if %2 {
      %c0_8 = arith.constant 0 : index
      %c0_9 = arith.constant 0 : index
      %10 = vector.load %arg2[%c0_8, %c0_9] : memref<1x256xf32, #tpu.memory_space<vmem>>, vector<1x256xf32>
      %c0_10 = arith.constant 0 : index
      %c0_11 = arith.constant 0 : index
      %11 = vector.load %arg4[%c0_10, %c0_11] : memref<8x1xf32, #tpu.memory_space<vmem>>, vector<8x1xf32>
      %12 = vector.broadcast %10 : vector<1x256xf32> to vector<8x256xf32>
      %13 = vector.broadcast %11 : vector<8x1xf32> to vector<8x256xf32>
      %14 = arith.mulf %12, %13 : vector<8x256xf32>
      %c0_12 = arith.constant 0 : index
      %c0_13 = arith.constant 0 : index
      %15 = vector.load %arg3[%c0_12, %c0_13] : memref<1x256xf32, #tpu.memory_space<vmem>>, vector<1x256xf32>
      %c0_14 = arith.constant 0 : index
      %c0_15 = arith.constant 0 : index
      %16 = vector.load %arg5[%c0_14, %c0_15] : memref<8x1xf32, #tpu.memory_space<vmem>>, vector<8x1xf32>
      %17 = vector.broadcast %15 : vector<1x256xf32> to vector<8x256xf32>
      %18 = vector.broadcast %16 : vector<8x1xf32> to vector<8x256xf32>
      %19 = arith.mulf %17, %18 : vector<8x256xf32>
      %20 = arith.addf %14, %19 : vector<8x256xf32>
      %c0_16 = arith.constant 0 : index
      %c0_17 = arith.constant 0 : index
      %21 = vector.load %arg6[%c0_16, %c0_17] : memref<8x1xf32, #tpu.memory_space<vmem>>, vector<8x1xf32>
      %22 = vector.broadcast %21 : vector<8x1xf32> to vector<8x256xf32>
      %23 = arith.addf %20, %22 : vector<8x256xf32>
      %24 = math.sin %23 : vector<8x256xf32>
      %c0_18 = arith.constant 0 : index
      %c0_19 = arith.constant 0 : index
      %25 = vector.load %arg9[%c0_18, %c0_19] : memref<8x256xf32, #tpu.memory_space<vmem>>, vector<8x256xf32>
      tpu.vector_store %arg9[%c0_18, %c0_19], %24 {strides = array<i32>} : memref<8x256xf32, #tpu.memory_space<vmem>>, vector<8x256xf32>,
    } else {
    }
    %c0 = arith.constant 0 : index
    %c0_1 = arith.constant 0 : index
    %c0_2 = arith.constant 0 : index
    %3 = vector.load %arg7[%c0, %c0_1, %c0_2] : memref<1x8x256xf32, #tpu.memory_space<vmem>>, vector<1x8x256xf32>
    %4 = vector.shape_cast %3 : vector<1x8x256xf32> to vector<8x256xf32>
    %c0_3 = arith.constant 0 : index
    %c0_4 = arith.constant 0 : index
    %5 = vector.load %arg9[%c0_3, %c0_4] : memref<8x256xf32, #tpu.memory_space<vmem>>, vector<8x256xf32>
    %6 = arith.addf %4, %5 : vector<8x256xf32>
    %c0_5 = arith.constant 0 : index
    %c0_6 = arith.constant 0 : index
    %c0_7 = arith.constant 0 : index
    %7 = vector.load %arg8[%c0_5, %c0_6, %c0_7] : memref<1x8x256xf32, #tpu.memory_space<vmem>>, vector<1x8x256xf32>
    %8 = vector.shape_cast %7 : vector<1x8x256xf32> to vector<8x256xf32>
    %9 = vector.shape_cast %6 : vector<8x256xf32> to vector<1x8x256xf32>
    tpu.vector_store %arg8[%c0_5, %c0_6, %c0_7], %9 {strides = array<i32>} : memref<1x8x256xf32, #tpu.memory_space<vmem>>, vector<1x8x256xf32>,
    return
  }
  func.func @transform_0(%arg0: i32, %arg1: i32) -> (i32, i32) {
    %c0_i32 = arith.constant 0 : i32
    %c0_i32_0 = arith.constant 0 : i32
    %c0_i32_1 = arith.constant 0 : i32
    return %c0_i32, %c0_i32_0 : i32, i32
  }
  func.func @transform_1(%arg0: i32, %arg1: i32) -> (i32, i32) {
    %c0_i32 = arith.constant 0 : i32
    %c0_i32_0 = arith.constant 0 : i32
    %c0_i32_1 = arith.constant 0 : i32
    return %c0_i32, %c0_i32_0 : i32, i32
  }
  func.func @transform_2(%arg0: i32, %arg1: i32) -> (i32, i32) {
    %c0_i32 = arith.constant 0 : i32
    %c0_i32_0 = arith.constant 0 : i32
    return %arg0, %c0_i32 : i32, i32
  }
  func.func @transform_3(%arg0: i32, %arg1: i32) -> (i32, i32) {
    %c0_i32 = arith.constant 0 : i32
    %c0_i32_0 = arith.constant 0 : i32
    return %arg0, %c0_i32 : i32, i32
  }
  func.func @transform_4(%arg0: i32, %arg1: i32) -> (i32, i32) {
    %c0_i32 = arith.constant 0 : i32
    %c0_i32_0 = arith.constant 0 : i32
    return %arg0, %c0_i32 : i32, i32
  }
  func.func @transform_5(%arg0: i32, %arg1: i32) -> (i32, i32, i32) {
    %c0_i32 = arith.constant 0 : i32
    %c0_i32_0 = arith.constant 0 : i32
    return %arg1, %arg0, %c0_i32 : i32, i32, i32
  }
  func.func @transform_6(%arg0: i32, %arg1: i32) -> (i32, i32, i32) {
    %c0_i32 = arith.constant 0 : i32
    %c0_i32_0 = arith.constant 0 : i32
    return %arg1, %arg0, %c0_i32 : i32, i32, i32
  }
}

</mosaic_0001>

<llo_original>
// kernel: tpu_custom_call.1
$region0: #{tpu_custom_call.1}
  #allocation0 [shape = 'u32[]', space=smem, size = 0x4, offset = 0x4, fixed_abs, tag = 'smem constant byte address 0x4 - core index']
  #allocation1 [shape = 'u32[72,128]{1,0:T(1,128)}', space=vmem, size = 0x9000, scoped, tag = 'internal scratch']
  #allocation2 [shape = 'f32[8,256]{1,0:T(8,128)}', space=vmem, size = 0x2000, scoped, tag = 'scratch operand']
  %s0 = inlined_call_operand.vmem [shape: f32[1,256], index: 0, kind: input, shape index: {}]
  %s1 = inlined_call_operand.vmem [shape: f32[1,256], index: 1, kind: input, shape index: {}]
  %s2 = inlined_call_operand.vmem [shape: f32[8,1], index: 2, kind: input, shape index: {}]
  %s3 = inlined_call_operand.vmem [shape: f32[8,1], index: 3, kind: input, shape index: {}]
  %s4 = inlined_call_operand.vmem [shape: f32[8,1], index: 4, kind: input, shape index: {}]
  %s5 = inlined_call_operand.hbm [shape: f32[2,8,256], index: 5, kind: input, shape index: {}, may-alias: {5,6}]
  %s6 = inlined_call_operand.hbm [shape: f32[2,8,256], index: 6, kind: output, shape index: {}, may-alias: {5,6}]
  %s7 = sld [smem:[#allocation0]]
  $region65: #{tpu_custom_call.1} parent=0
    _
  %s9 = ssub.s32 1, %s7
  %s10 = scalar_select 0, %s9, %s7
  $region1: #{tpu_custom_call.1} parent=0
    #allocation3 [shape = 'u8[16384]{0}', space=vmem, size = 0x4000, scoped, tag = 'input window, operand 5']
    #allocation4 [shape = 's32[2]{0}', space=sflag, size = 0x8, scoped, tag = 'scoped memory for tpu_custom_call.1']
    #allocation5 [shape = 's32[2]{0}', space=sflag, size = 0x8, scoped, tag = 'scoped memory for tpu_custom_call.1']
    #allocation6 [shape = 'u8[16384]{0}', space=vmem, size = 0x4000, scoped, tag = 'output window, operand 0']
    %11 = vsyncpa [#allocation4], 0
    %s12 = scalar_lea.sflag [#allocation4], 1
    %13 = vsyncpa %s12, 0
    %14 = vsyncpa [#allocation5], 0
    %s15 = scalar_lea.sflag [#allocation5], 1
    %16 = vsyncpa %s15, 0
    loop: start=0, step=1, limit=4
    $region2: #{tpu_custom_call.1} parent=1 // loop_pre_header
      _
    $region3: #{tpu_custom_call.1} parent=1 // loop_header
      %s18 = sphi 0, %s22
      %p19 = scmp.ge.s32.totalorder %s18, 4
      %s25 = sphi 0, %s37
      %s26 = sphi 0, %s33
      %s27 = sphi 0, %s25
      %s28 = sphi 0, %s26
      %s29 = sphi 0, %s27
      %s30 = sphi 0, %s28
      %s38 = sphi 0, %s38
      %s40 = sphi 0, %s38
      %s41 = sphi 0, %s40
      %s55 = sphi 0, %s41
      %s59 = sphi 0, %s59
      %s61 = sphi 0, %s59
      %s62 = sphi 0, %s61
      %s76 = sphi 0, %s62
      %s82 = sphi 0, %s84
      %s85 = sphi 0, %s82
      %s86 = sphi 0, %s85
      %s102 = sphi 0, %s86
      %s108 = sphi 0, %s110
      %s111 = sphi 0, %s108
      %s112 = sphi 0, %s111
      %s128 = sphi 0, %s112
      %s134 = sphi 0, %s136
      %s137 = sphi 0, %s134
      %s138 = sphi 0, %s137
      %s154 = sphi 0, %s138
      %s162 = sphi 0, %s164
      %s165 = sphi 0, %s162
      %s166 = sphi 0, %s165
      %s182 = sphi 0, %s166
      %s190 = sphi 0, %s192
      %s193 = sphi 0, %s190
      %s194 = sphi 0, %s193
      %s210 = sphi 0, %s194
    $region4: #{tpu_custom_call.1} parent=1 // loop_header_branch
      %21 = sbr.rel (%p19) target = $region8
    $region5: #{tpu_custom_call.1} parent=1 // loop_body
      %s23 = ssub.s32 %s18, 1
      %s24 = ssub.s32 %s18, 2
      %s31 = sadd.s32 1, %s26
      %p32 = scmp.ge.s32.totalorder %s31, 2
      %s33 = scalar_select %p32, 0, %s31
      %s34 = sadd.s32 1, %s25
      %s35 = scalar_select %p32, %s34, %s25
      %p36 = scmp.ge.s32.totalorder %s35, 1
      %s37 = scalar_select %p36, 0, %s35
      %s39 = sadd.s32 %s38, 1
      %p42 = scmp.eq.s32.totalorder %s18, 1
      %p43 = scmp.ne.s32.totalorder %s38, %s40
      %p44 = scmp.eq.s32.totalorder %s18, 0
      %p45 = por %p43, %p44
      %p46 = scmp.ne.s32.totalorder %s38, %s40
      %p47 = scmp.eq.s32.totalorder %s23, 1
      %p48 = por %p46, %p47
      %p49 = scmp.ne.s32.totalorder %s40, %s41
      %p50 = scmp.eq.s32.totalorder %s23, 0
      %p51 = por %p49, %p50
      %p52 = scmp.ne.s32.totalorder %s40, %s41
      %p53 = scmp.eq.s32.totalorder %s24, 1
      %p54 = por %p52, %p53
      %p56 = scmp.ne.s32.totalorder %s41, %s55
      %p57 = scmp.eq.s32.totalorder %s24, 0
      %p58 = por %p56, %p57
      %s60 = sadd.s32 %s59, 1
      %p63 = scmp.eq.s32.totalorder %s18, 1
      %p64 = scmp.ne.s32.totalorder %s59, %s61
      %p65 = scmp.eq.s32.totalorder %s18, 0
      %p66 = por %p64, %p65
      %p67 = scmp.ne.s32.totalorder %s59, %s61
      %p68 = scmp.eq.s32.totalorder %s23, 1
      %p69 = por %p67, %p68
      %p70 = scmp.ne.s32.totalorder %s61, %s62
      %p71 = scmp.eq.s32.totalorder %s23, 0
      %p72 = por %p70, %p71
      %p73 = scmp.ne.s32.totalorder %s61, %s62
      %p74 = scmp.eq.s32.totalorder %s24, 1
      %p75 = por %p73, %p74
      %p77 = scmp.ne.s32.totalorder %s62, %s76
      %p78 = scmp.eq.s32.totalorder %s24, 0
      %p79 = por %p77, %p78
      %s80 = ssub.s32 %s25, %s37
      %p81 = scmp.eq.s32.totalorder %s80, 0
      %s83 = sadd.s32 %s82, 1
      %s84 = scalar_select %p81, %s82, %s83
      %p87 = pneg %p81
      %p88 = scmp.eq.s32.totalorder %s18, 1
      %p89 = por %p87, %p88
      %p90 = scmp.ne.s32.totalorder %s82, %s85
      %p91 = scmp.eq.s32.totalorder %s18, 0
      %p92 = por %p90, %p91
      %p93 = scmp.ne.s32.totalorder %s82, %s85
      %p94 = scmp.eq.s32.totalorder %s23, 1
      %p95 = por %p93, %p94
      %p96 = scmp.ne.s32.totalorder %s85, %s86
      %p97 = scmp.eq.s32.totalorder %s23, 0
      %p98 = por %p96, %p97
      %p99 = scmp.ne.s32.totalorder %s85, %s86
      %p100 = scmp.eq.s32.totalorder %s24, 1
      %p101 = por %p99, %p100
      %p103 = scmp.ne.s32.totalorder %s86, %s102
      %p104 = scmp.eq.s32.totalorder %s24, 0
      %p105 = por %p103, %p104
      %s106 = ssub.s32 %s25, %s37
      %p107 = scmp.eq.s32.totalorder %s106, 0
      %s109 = sadd.s32 %s108, 1
      %s110 = scalar_select %p107, %s108, %s109
      %p113 = pneg %p107
      %p114 = scmp.eq.s32.totalorder %s18, 1
      %p115 = por %p113, %p114
      %p116 = scmp.ne.s32.totalorder %s108, %s111
      %p117 = scmp.eq.s32.totalorder %s18, 0
      %p118 = por %p116, %p117
      %p119 = scmp.ne.s32.totalorder %s108, %s111
      %p120 = scmp.eq.s32.totalorder %s23, 1
      %p121 = por %p119, %p120
      %p122 = scmp.ne.s32.totalorder %s111, %s112
      %p123 = scmp.eq.s32.totalorder %s23, 0
      %p124 = por %p122, %p123
      %p125 = scmp.ne.s32.totalorder %s111, %s112
      %p126 = scmp.eq.s32.totalorder %s24, 1
      %p127 = por %p125, %p126
      %p129 = scmp.ne.s32.totalorder %s112, %s128
      %p130 = scmp.eq.s32.totalorder %s24, 0
      %p131 = por %p129, %p130
      %s132 = ssub.s32 %s25, %s37
      %p133 = scmp.eq.s32.totalorder %s132, 0
      %s135 = sadd.s32 %s134, 1
      %s136 = scalar_select %p133, %s134, %s135
      %p139 = pneg %p133
      %p140 = scmp.eq.s32.totalorder %s18, 1
      %p141 = por %p139, %p140
      %p142 = scmp.ne.s32.totalorder %s134, %s137
      %p143 = scmp.eq.s32.totalorder %s18, 0
      %p144 = por %p142, %p143
      %p145 = scmp.ne.s32.totalorder %s134, %s137
      %p146 = scmp.eq.s32.totalorder %s23, 1
      %p147 = por %p145, %p146
      %p148 = scmp.ne.s32.totalorder %s137, %s138
      %p149 = scmp.eq.s32.totalorder %s23, 0
      %p150 = por %p148, %p149
      %p151 = scmp.ne.s32.totalorder %s137, %s138
      %p152 = scmp.eq.s32.totalorder %s24, 1
      %p153 = por %p151, %p152
      %p155 = scmp.ne.s32.totalorder %s138, %s154
      %p156 = scmp.eq.s32.totalorder %s24, 0
      %p157 = por %p155, %p156
      %s158 = ssub.s32 %s26, %s33
      %s159 = ssub.s32 %s25, %s37
      %s160 = sor.u32 %s158, %s159
      %p161 = scmp.eq.s32.totalorder %s160, 0
      %s163 = sadd.s32 %s162, 1
      %s164 = scalar_select %p161, %s162, %s163
      %p167 = pneg %p161
      %p168 = scmp.eq.s32.totalorder %s18, 1
      %p169 = por %p167, %p168
      %p170 = scmp.ne.s32.totalorder %s162, %s165
      %p171 = scmp.eq.s32.totalorder %s18, 0
      %p172 = por %p170, %p171
      %p173 = scmp.ne.s32.totalorder %s162, %s165
      %p174 = scmp.eq.s32.totalorder %s23, 1
      %p175 = por %p173, %p174
      %p176 = scmp.ne.s32.totalorder %s165, %s166
      %p177 = scmp.eq.s32.totalorder %s23, 0
      %p178 = por %p176, %p177
      %p179 = scmp.ne.s32.totalorder %s165, %s166
      %p180 = scmp.eq.s32.totalorder %s24, 1
      %p181 = por %p179, %p180
      %p183 = scmp.ne.s32.totalorder %s166, %s182
      %p184 = scmp.eq.s32.totalorder %s24, 0
      %p185 = por %p183, %p184
      %s186 = ssub.s32 %s26, %s33
      %s187 = ssub.s32 %s25, %s37
      %s188 = sor.u32 %s186, %s187
      %p189 = scmp.eq.s32.totalorder %s188, 0
      %s191 = sadd.s32 %s190, 1
      %s192 = scalar_select %p189, %s190, %s191
      %p195 = pneg %p189
      %p196 = scmp.eq.s32.totalorder %s18, 1
      %p197 = por %p195, %p196
      %p198 = scmp.ne.s32.totalorder %s190, %s193
      %p199 = scmp.eq.s32.totalorder %s18, 0
      %p200 = por %p198, %p199
      %p201 = scmp.ne.s32.totalorder %s190, %s193
      %p202 = scmp.eq.s32.totalorder %s23, 1
      %p203 = por %p201, %p202
      %p204 = scmp.ne.s32.totalorder %s193, %s194
      %p205 = scmp.eq.s32.totalorder %s23, 0
      %p206 = por %p204, %p205
      %p207 = scmp.ne.s32.totalorder %s193, %s194
      %p208 = scmp.eq.s32.totalorder %s24, 1
      %p209 = por %p207, %p208
      %p211 = scmp.ne.s32.totalorder %s194, %s210
      %p212 = scmp.eq.s32.totalorder %s24, 0
      %p213 = por %p211, %p212
      %p214 = scmp.le.s32.totalorder 1, %s18
      %p215 = scmp.lt.s32.totalorder %s18, 3
      %p216 = pnand %p214, %p215
      %p217 = pneg %p216
      // Predicated region
      $region9: #{tpu_custom_call.1} parent=5 // pred_check
        _
      $region10: #{tpu_custom_call.1} parent=5 // pred_check_branch
        %219 = sbr.rel (%p216) target = $region12
      $region11: #{tpu_custom_call.1} parent=5 // pred_region
        %s220 = ssub.s32 %s18, 1
        // Predicated region
        $region13: #{tpu_custom_call.1} parent=11 // pred_check
          %p221 = pneg %p51
        $region14: #{tpu_custom_call.1} parent=11 // pred_check_branch
          %223 = sbr.rel (%p221) target = $region16
        $region15: #{tpu_custom_call.1} parent=11 // pred_region
          _
        $region16: #{tpu_custom_call.1} parent=11 // pred_fallthru
          _
        // Predicated region
        $region17: #{tpu_custom_call.1} parent=11 // pred_check
          %p224 = pneg %p72
        $region18: #{tpu_custom_call.1} parent=11 // pred_check_branch
          %226 = sbr.rel (%p224) target = $region20
        $region19: #{tpu_custom_call.1} parent=11 // pred_region
          _
        $region20: #{tpu_custom_call.1} parent=11 // pred_fallthru
          _
        // Predicated region
        $region21: #{tpu_custom_call.1} parent=11 // pred_check
          %p227 = pneg %p98
        $region22: #{tpu_custom_call.1} parent=11 // pred_check_branch
          %229 = sbr.rel (%p227) target = $region24
        $region23: #{tpu_custom_call.1} parent=11 // pred_region
          %p230 = scmp.lt.s32.totalorder %s27, 0
          %s231 = scalar_select %p230, %s27, 0
          %s232 = smul.addr %s231, 8
          %s233 = scalar_lea.vmem %s2, %s232
        $region24: #{tpu_custom_call.1} parent=11 // pred_fallthru
          _
        // Predicated region
        $region25: #{tpu_custom_call.1} parent=11 // pred_check
          %p234 = pneg %p124
        $region26: #{tpu_custom_call.1} parent=11 // pred_check_branch
          %236 = sbr.rel (%p234) target = $region28
        $region27: #{tpu_custom_call.1} parent=11 // pred_region
          %p237 = scmp.lt.s32.totalorder %s27, 0
          %s238 = scalar_select %p237, %s27, 0
          %s239 = smul.addr %s238, 8
          %s240 = scalar_lea.vmem %s3, %s239
        $region28: #{tpu_custom_call.1} parent=11 // pred_fallthru
          _
        // Predicated region
        $region29: #{tpu_custom_call.1} parent=11 // pred_check
          %p241 = pneg %p150
        $region30: #{tpu_custom_call.1} parent=11 // pred_check_branch
          %243 = sbr.rel (%p241) target = $region32
        $region31: #{tpu_custom_call.1} parent=11 // pred_region
          %p244 = scmp.lt.s32.totalorder %s27, 0
          %s245 = scalar_select %p244, %s27, 0
          %s246 = smul.addr %s245, 8
          %s247 = scalar_lea.vmem %s4, %s246
        $region32: #{tpu_custom_call.1} parent=11 // pred_fallthru
          _
      $region12: #{tpu_custom_call.1} parent=5 // pred_fallthru
        _
      %p248 = scmp.lt.s32.totalorder %s18, 2
      // Predicated region
      $region33: #{tpu_custom_call.1} parent=5 // pred_check
        %p249 = pneg %p248
      $region34: #{tpu_custom_call.1} parent=5 // pred_check_branch
        %251 = sbr.rel (%p249) target = $region36
      $region35: #{tpu_custom_call.1} parent=5 // pred_region
        // Predicated region
        $region37: #{tpu_custom_call.1} parent=35 // pred_check
          %p252 = pneg %p172
        $region38: #{tpu_custom_call.1} parent=35 // pred_check_branch
          %254 = sbr.rel (%p252) target = $region40
        $region39: #{tpu_custom_call.1} parent=35 // pred_region
          %s255 = sand.u32 %s162, 1
          %s256 = scalar_lea.sflag [#allocation4], %s255
          %s257 = sand.u32 %s162, 1
          %s258 = smul.addr %s257, 16
          %s259 = scalar_lea.vmem [#allocation3], %s258
          %261 = vsyncadd %s256, 0
          %s262 = smul.addr %s25, 2
          %s263 = smul.addr %s26, 2
          %s264 = sadd.s32 %s262, %s263
          %s265 = smul.addr %s264, 8
          %s266 = scalar_lea.hbm %s5, %s265
          %s268 = sshll.u32 %s266, 4
          %s269 = int_to_ptr.hbm [resolvable:$true] %s268
          %s270 = sshll.u32 %s259, 4
          %s271 = int_to_ptr.vmem [resolvable:$true] %s270
          %273 = dma.hbm_to_vmem [thread:$0]  %s269, 256, %s271, %s256
        $region40: #{tpu_custom_call.1} parent=35 // pred_fallthru
          _
      $region36: #{tpu_custom_call.1} parent=5 // pred_fallthru
        _
      %p274 = scmp.le.s32.totalorder 1, %s18
      %p275 = scmp.lt.s32.totalorder %s18, 3
      %p276 = pnand %p274, %p275
      %p277 = pneg %p276
      // Predicated region
      $region41: #{tpu_custom_call.1} parent=5 // pred_check
        _
      $region42: #{tpu_custom_call.1} parent=5 // pred_check_branch
        %279 = sbr.rel (%p276) target = $region44
      $region43: #{tpu_custom_call.1} parent=5 // pred_region
        %s280 = ssub.s32 %s18, 1
        %s281 = sand.u32 %s165, 1
        %s282 = scalar_lea.sflag [#allocation4], %s281
        %s283 = sand.u32 %s165, 1
        %s284 = smul.addr %s283, 16
        %s285 = scalar_lea.vmem [#allocation3], %s284
        // Predicated region
        $region45: #{tpu_custom_call.1} parent=43 // pred_check
          %p286 = pneg %p178
        $region46: #{tpu_custom_call.1} parent=43 // pred_check_branch
          %288 = sbr.rel (%p286) target = $region48
        $region47: #{tpu_custom_call.1} parent=43 // pred_region
          %290 = dma.done %s282, 256
        $region48: #{tpu_custom_call.1} parent=43 // pred_fallthru
          _
        %p291 = pneg %p51
        %p292 = pneg %p48
        %p293 = pneg %p72
        %p294 = pneg %p69
        %p295 = scmp.lt.s32.totalorder %s27, 0
        %s296 = scalar_select %p295, %s27, 0
        %s297 = smul.addr %s296, 8
        %s298 = scalar_lea.vmem %s2, %s297
        %p299 = pneg %p98
        %p300 = pneg %p95
        %p301 = scmp.lt.s32.totalorder %s27, 0
        %s302 = scalar_select %p301, %s27, 0
        %s303 = smul.addr %s302, 8
        %s304 = scalar_lea.vmem %s3, %s303
        %p305 = pneg %p124
        %p306 = pneg %p121
        %p307 = scmp.lt.s32.totalorder %s27, 0
        %s308 = scalar_select %p307, %s27, 0
        %s309 = smul.addr %s308, 8
        %s310 = scalar_lea.vmem %s4, %s309
        %p311 = pneg %p150
        %p312 = pneg %p147
        %s313 = sand.u32 %s165, 1
        %s314 = scalar_lea.sflag [#allocation4], %s313
        %s315 = sand.u32 %s165, 1
        %s316 = smul.addr %s315, 16
        %s317 = scalar_lea.vmem [#allocation3], %s316
        %p318 = pneg %p178
        %p319 = pneg %p175
        %p320 = pneg %p206
        %p321 = pneg %p203
        %s322 = sand.u32 %s193, 1
        %s323 = scalar_lea.sflag [#allocation5], %s322
        %s324 = sand.u32 %s193, 1
        %s325 = smul.addr %s324, 16
        %s326 = scalar_lea.vmem [#allocation6], %s325
        %p327 = scmp.lt.s32.totalorder %s27, 0
        %s328 = scalar_select %p327, %s27, 0
        %s329 = smul.addr %s328, 8
        %s330 = scalar_lea.vmem %s2, %s329
        %p331 = scmp.lt.s32.totalorder %s27, 0
        %s332 = scalar_select %p331, %s27, 0
        %s333 = smul.addr %s332, 8
        %s334 = scalar_lea.vmem %s3, %s333
        %p335 = scmp.lt.s32.totalorder %s27, 0
        %s336 = scalar_select %p335, %s27, 0
        %s337 = smul.addr %s336, 8
        %s338 = scalar_lea.vmem %s4, %s337
        %p339 = scmp.eq.s32.totalorder %s28, 0
        // Predicated region
        $region49: #{tpu_custom_call.1} parent=43 // pred_check
          %p340 = pneg %p339
        $region50: #{tpu_custom_call.1} parent=43 // pred_check_branch
          %342 = sbr.rel (%p340) target = $region52
        $region51: #{tpu_custom_call.1} parent=43 // pred_region
          %v343 = vld [vmem:[%s0] sm:$0x3]
          %v344 = vld [vmem:[%s330] sm:$0xff]
          %v346 = vperm.slane %v343, 0
          %v347 = vperm.slane %v343, 1
          %351 = vset.pattern.permute.xlu0 0
          %352 = vperm.xlu0 %351, %v344
          %v353 = vpop.permute.xlu0 %352
          %v355 = vmul.f32 %v346, %v353
          %v356 = vmul.f32 %v347, %v353
          %v357 = vld [vmem:[%s1] sm:$0x3]
          %v358 = vld [vmem:[%s334] sm:$0xff]
          %v360 = vperm.slane %v357, 0
          %v361 = vperm.slane %v357, 1
          %365 = vset.pattern.permute.xlu0 0
          %366 = vperm.xlu0 %365, %v358
          %v367 = vpop.permute.xlu0 %366
          %v369 = vmul.f32 %v360, %v367
          %v370 = vmul.f32 %v361, %v367
          %v371 = vadd.f32 %v355, %v369
          %v372 = vadd.f32 %v356, %v370
          %v373 = vld [vmem:[%s338] sm:$0xff]
          %375 = vset.pattern.permute.xlu0 0
          %376 = vperm.xlu0 %375, %v373
          %v377 = vpop.permute.xlu0 %376
          %v379 = vadd.f32 %v371, %v377
          %v380 = vadd.f32 %v372, %v377
          %v381 = vand.u32 2147483647, %v379
          %vm382 = vcmp.le.f32.partialorder %v381, 0.7853982
          %vm383 = vcmp.lt.s32.totalorder %v379, 0
          %v384 = vand.u32 %v379, 2139095040
          %v385 = vshrl.u32 %v384, 23
          %v386 = vsub.s32 %v385, 127
          %v387 = vand.u32 2147483647, %v379
          %v388 = vand.u32 %v387, 8388607
          %v389 = vor.u32 %v388, 8388608
          %v390 = vsub.s32 0, %v389
          %v391 = vadd.s32 %v386, 1
          %vm392 = vcmp.gt.s32.totalorder %v391, 0
          %v393 = vsel %vm392, %v391, 0
          %v394 = vshrl.u32 %v393, 5
          %v395 = vand.u32 %v393, 31
          %v396 = vsub.s32 32, %v395
          %v397 = vshrl.u32 683565275, %v396
          %v398 = vshll.u32 683565275, %v395
          %v399 = vshrl.u32 2475754826, %v396
          %v400 = vor.u32 %v398, %v399
          %v401 = vshll.u32 2475754826, %v395
          %v402 = vshrl.u32 2131351028, %v396
          %v403 = vor.u32 %v401, %v402
          %v404 = vshll.u32 2131351028, %v395
          %v405 = vshrl.u32 2102212464, %v396
          %v406 = vor.u32 %v404, %v405
          %v407 = vshll.u32 2102212464, %v395
          %v408 = vshrl.u32 920167782, %v396
          %v409 = vor.u32 %v407, %v408
          %v410 = vshll.u32 920167782, %v395
          %v411 = vshrl.u32 1326507024, %v396
          %v412 = vor.u32 %v410, %v411
          %vm413 = vcmp.lt.s32.totalorder %v394, 1
          %vm414 = vcmp.lt.s32.totalorder %v394, 2
          %vm415 = vcmp.lt.s32.totalorder %v394, 3
          %vm416 = vcmp.lt.s32.totalorder %v394, 4
          %v417 = vsel %vm413, %v397, %v400
          %v418 = vsel %vm416, %v406, 2102212464
          %v419 = vsel %vm415, %v403, %v418
          %v420 = vsel %vm414, %v417, %v419
          %v421 = vsel %vm413, %v400, %v403
          %v422 = vsel %vm416, %v409, 920167782
          %v423 = vsel %vm415, %v406, %v422
          %v424 = vsel %vm414, %v421, %v423
          %v425 = vsel %vm413, %v403, %v406
          %v426 = vsel %vm416, %v412, 1326507024
          %v427 = vsel %vm415, %v409, %v426
          %v428 = vsel %vm414, %v425, %v427
          %v429 = vshll.u32 %v389, 8
          %v430 = vand.u32 %v429, 65535
          %v431 = vshrl.u32 %v429, 16
          %v432 = vand.u32 %v428, 65535
          %v433 = vshrl.u32 %v428, 16
          %v434 = vmul.u32 %v430, %v432
          %v435 = vmul.u32 %v430, %v433
          %v436 = vmul.u32 %v431, %v432
          %v437 = vmul.u32 %v431, %v433
          %v438 = vshll.u32 %v435, 16
          %v439 = vshrl.u32 %v435, 16
          %v440 = vshll.u32 %v436, 16
          %v441 = vshrl.u32 %v436, 16
          %vm442 = vc.u32 %v434, %v438
          %v443 = vsel %vm442, 1, 0
          %v444 = vadd.s32 %v434, %v438
          %v445 = vadd.s32 %v437, %v443
          %vm446 = vc.u32 %v444, %v440
          %v447 = vsel %vm446, 1, 0
          %v448 = vadd.s32 %v444, %v440
          %v449 = vadd.s32 %v445, %v447
          %v450 = vadd.s32 %v449, %v439
          %v451 = vadd.s32 %v450, %v441
          %v452 = vand.u32 %v429, 65535
          %v453 = vshrl.u32 %v429, 16
          %v454 = vand.u32 %v424, 65535
          %v455 = vshrl.u32 %v424, 16
          %v456 = vmul.u32 %v452, %v454
          %v457 = vmul.u32 %v452, %v455
          %v458 = vmul.u32 %v453, %v454
          %v459 = vmul.u32 %v453, %v455
          %v460 = vshll.u32 %v457, 16
          %v461 = vshrl.u32 %v457, 16
          %v462 = vshll.u32 %v458, 16
          %v463 = vshrl.u32 %v458, 16
          %vm464 = vc.u32 %v456, %v460
          %v465 = vsel %vm464, 1, 0
          %v466 = vadd.s32 %v456, %v460
          %v467 = vadd.s32 %v459, %v465
          %vm468 = vc.u32 %v466, %v462
          %v469 = vsel %vm468, 1, 0
          %v470 = vadd.s32 %v466, %v462
          %v471 = vadd.s32 %v467, %v469
          %v472 = vadd.s32 %v471, %v461
          %v473 = vadd.s32 %v472, %v463
          %v474 = vmul.u32 %v429, %v420
          %v475 = vadd.s32 %v451, %v470
          %vm476 = vc.u32 %v451, %v470
          %v477 = vadd.s32 %v473, 1
          %v478 = vsel %vm476, %v477, %v473
          %v479 = vadd.s32 %v474, %v478
          %v480 = vadd.s32 %v479, 536870912
          %v481 = vshrl.u32 %v480, 30
          %v482 = vshll.u32 %v481, 30
          %v483 = vsub.s32 %v479, %v482
          %vm484 = vcmp.lt.s32.totalorder %v483, 0
          %v485 = vsub.s32 0, %v483
          %v486 = vsel %vm484, %v485, %v483
          %v487 = vclz %v486
          %v488 = vsub.s32 %v487, 2
          %vm489 = vcmp.gt.s32.totalorder 0, %v488
          %v490 = vsel %vm489, 0, %v488
          %v491 = vsub.s32 32, %v490
          %v492 = vshll.u32 %v483, %v490
          %v493 = vshrl.u32 %v475, %v491
          %v494 = vor.u32 %v492, %v493
          %v495 = vsub.s32 4294967266, %v490
          %v496 = vadd.s32 %v495, 127
          %v497 = vshll.u32 %v496, 23
          %v498 = vor.u32 4788187, %v497
          %v499 = vand.u32 2147483647, %v498
          %v501 = vcvt.s32.f32 %v494
          %v502 = vmul.f32 %v501, %v499
          %v503 = vxor.u32 %v502, 2147483648
          %v504 = vsel %vm383, %v503, %v502
          %v505 = vsub.s32 4, %v481
          %v506 = vsel %vm383, %v505, %v481
          %v507 = vsel %vm382, %v379, %v504
          %v508 = vsel %vm382, 0, %v506
          %v509 = vmul.f32 %v507, %v507
          %v510 = vmul.f32 %v509, -0.001358992
          %v511 = vadd.f32 %v510, 0.041655596
          %v512 = vmul.f32 %v509, %v511
          %v513 = vadd.f32 %v512, -0.4999988
          %v514 = vmul.f32 %v509, %v513
          %v515 = vadd.f32 1.0, %v514
          %v516 = vmul.f32 %v507, %v507
          %v517 = vmul.f32 %v516, -0.00019511016
          %v518 = vadd.f32 %v517, 0.008332121
          %v519 = vmul.f32 %v516, %v518
          %v520 = vadd.f32 %v519, -0.16666654
          %v521 = vmul.f32 %v516, %v520
          %v522 = vadd.f32 %v521, 1.0
          %v523 = vmul.f32 %v522, %v507
          %vm524 = vweird.f32 %v379
          %v525 = vadd.s32 %v508, 3
          %v526 = vand.u32 %v525, 3
          %vm527 = vcmp.lt.s32.totalorder %v526, 2
          %vm528 = vcmp.eq.s32.totalorder %v526, 0
          %v529 = vxor.u32 %v523, 2147483648
          %v530 = vsel %vm528, %v515, %v529
          %vm531 = vcmp.eq.s32.totalorder %v526, 2
          %v532 = vxor.u32 %v515, 2147483648
          %v533 = vsel %vm531, %v532, %v523
          %v534 = vsel %vm527, %v530, %v533
          %v535 = vsel %vm524, nan, %v534
          %v536 = vand.u32 2147483647, %v380
          %vm537 = vcmp.le.f32.partialorder %v536, 0.7853982
          %vm538 = vcmp.lt.s32.totalorder %v380, 0
          %v539 = vand.u32 %v380, 2139095040
          %v540 = vshrl.u32 %v539, 23
          %v541 = vsub.s32 %v540, 127
          %v542 = vand.u32 2147483647, %v380
          %v543 = vand.u32 %v542, 8388607
          %v544 = vor.u32 %v543, 8388608
          %v545 = vsub.s32 0, %v544
          %v546 = vadd.s32 %v541, 1
          %vm547 = vcmp.gt.s32.totalorder %v546, 0
          %v548 = vsel %vm547, %v546, 0
          %v549 = vshrl.u32 %v548, 5
          %v550 = vand.u32 %v548, 31
          %v551 = vsub.s32 32, %v550
          %v552 = vshrl.u32 683565275, %v551
          %v553 = vshll.u32 683565275, %v550
          %v554 = vshrl.u32 2475754826, %v551
          %v555 = vor.u32 %v553, %v554
          %v556 = vshll.u32 2475754826, %v550
          %v557 = vshrl.u32 2131351028, %v551
          %v558 = vor.u32 %v556, %v557
          %v559 = vshll.u32 2131351028, %v550
          %v560 = vshrl.u32 2102212464, %v551
          %v561 = vor.u32 %v559, %v560
          %v562 = vshll.u32 2102212464, %v550
          %v563 = vshrl.u32 920167782, %v551
          %v564 = vor.u32 %v562, %v563
          %v565 = vshll.u32 920167782, %v550
          %v566 = vshrl.u32 1326507024, %v551
          %v567 = vor.u32 %v565, %v566
          %vm568 = vcmp.lt.s32.totalorder %v549, 1
          %vm569 = vcmp.lt.s32.totalorder %v549, 2
          %vm570 = vcmp.lt.s32.totalorder %v549, 3
          %vm571 = vcmp.lt.s32.totalorder %v549, 4
          %v572 = vsel %vm568, %v552, %v555
          %v573 = vsel %vm571, %v561, 2102212464
          %v574 = vsel %vm570, %v558, %v573
          %v575 = vsel %vm569, %v572, %v574
          %v576 = vsel %vm568, %v555, %v558
          %v577 = vsel %vm571, %v564, 920167782
          %v578 = vsel %vm570, %v561, %v577
          %v579 = vsel %vm569, %v576, %v578
          %v580 = vsel %vm568, %v558, %v561
          %v581 = vsel %vm571, %v567, 1326507024
          %v582 = vsel %vm570, %v564, %v581
          %v583 = vsel %vm569, %v580, %v582
          %v584 = vshll.u32 %v544, 8
          %v585 = vand.u32 %v584, 65535
          %v586 = vshrl.u32 %v584, 16
          %v587 = vand.u32 %v583, 65535
          %v588 = vshrl.u32 %v583, 16
          %v589 = vmul.u32 %v585, %v587
          %v590 = vmul.u32 %v585, %v588
          %v591 = vmul.u32 %v586, %v587
          %v592 = vmul.u32 %v586, %v588
          %v593 = vshll.u32 %v590, 16
          %v594 = vshrl.u32 %v590, 16
          %v595 = vshll.u32 %v591, 16
          %v596 = vshrl.u32 %v591, 16
          %vm597 = vc.u32 %v589, %v593
          %v598 = vsel %vm597, 1, 0
          %v599 = vadd.s32 %v589, %v593
          %v600 = vadd.s32 %v592, %v598
          %vm601 = vc.u32 %v599, %v595
          %v602 = vsel %vm601, 1, 0
          %v603 = vadd.s32 %v599, %v595
          %v604 = vadd.s32 %v600, %v602
          %v605 = vadd.s32 %v604, %v594
          %v606 = vadd.s32 %v605, %v596
          %v607 = vand.u32 %v584, 65535
          %v608 = vshrl.u32 %v584, 16
          %v609 = vand.u32 %v579, 65535
          %v610 = vshrl.u32 %v579, 16
          %v611 = vmul.u32 %v607, %v609
          %v612 = vmul.u32 %v607, %v610
          %v613 = vmul.u32 %v608, %v609
          %v614 = vmul.u32 %v608, %v610
          %v615 = vshll.u32 %v612, 16
          %v616 = vshrl.u32 %v612, 16
          %v617 = vshll.u32 %v613, 16
          %v618 = vshrl.u32 %v613, 16
          %vm619 = vc.u32 %v611, %v615
          %v620 = vsel %vm619, 1, 0
          %v621 = vadd.s32 %v611, %v615
          %v622 = vadd.s32 %v614, %v620
          %vm623 = vc.u32 %v621, %v617
          %v624 = vsel %vm623, 1, 0
          %v625 = vadd.s32 %v621, %v617
          %v626 = vadd.s32 %v622, %v624
          %v627 = vadd.s32 %v626, %v616
          %v628 = vadd.s32 %v627, %v618
          %v629 = vmul.u32 %v584, %v575
          %v630 = vadd.s32 %v606, %v625
          %vm631 = vc.u32 %v606, %v625
          %v632 = vadd.s32 %v628, 1
          %v633 = vsel %vm631, %v632, %v628
          %v634 = vadd.s32 %v629, %v633
          %v635 = vadd.s32 %v634, 536870912
          %v636 = vshrl.u32 %v635, 30
          %v637 = vshll.u32 %v636, 30
          %v638 = vsub.s32 %v634, %v637
          %vm639 = vcmp.lt.s32.totalorder %v638, 0
          %v640 = vsub.s32 0, %v638
          %v641 = vsel %vm639, %v640, %v638
          %v642 = vclz %v641
          %v643 = vsub.s32 %v642, 2
          %vm644 = vcmp.gt.s32.totalorder 0, %v643
          %v645 = vsel %vm644, 0, %v643
          %v646 = vsub.s32 32, %v645
          %v647 = vshll.u32 %v638, %v645
          %v648 = vshrl.u32 %v630, %v646
          %v649 = vor.u32 %v647, %v648
          %v650 = vsub.s32 4294967266, %v645
          %v651 = vadd.s32 %v650, 127
          %v652 = vshll.u32 %v651, 23
          %v653 = vor.u32 4788187, %v652
          %v654 = vand.u32 2147483647, %v653
          %v656 = vcvt.s32.f32 %v649
          %v657 = vmul.f32 %v656, %v654
          %v658 = vxor.u32 %v657, 2147483648
          %v659 = vsel %vm538, %v658, %v657
          %v660 = vsub.s32 4, %v636
          %v661 = vsel %vm538, %v660, %v636
          %v662 = vsel %vm537, %v380, %v659
          %v663 = vsel %vm537, 0, %v661
          %v664 = vmul.f32 %v662, %v662
          %v665 = vmul.f32 %v664, -0.001358992
          %v666 = vadd.f32 %v665, 0.041655596
          %v667 = vmul.f32 %v664, %v666
          %v668 = vadd.f32 %v667, -0.4999988
          %v669 = vmul.f32 %v664, %v668
          %v670 = vadd.f32 1.0, %v669
          %v671 = vmul.f32 %v662, %v662
          %v672 = vmul.f32 %v671, -0.00019511016
          %v673 = vadd.f32 %v672, 0.008332121
          %v674 = vmul.f32 %v671, %v673
          %v675 = vadd.f32 %v674, -0.16666654
          %v676 = vmul.f32 %v671, %v675
          %v677 = vadd.f32 %v676, 1.0
          %v678 = vmul.f32 %v677, %v662
          %vm679 = vweird.f32 %v380
          %v680 = vadd.s32 %v663, 3
          %v681 = vand.u32 %v680, 3
          %vm682 = vcmp.lt.s32.totalorder %v681, 2
          %vm683 = vcmp.eq.s32.totalorder %v681, 0
          %v684 = vxor.u32 %v678, 2147483648
          %v685 = vsel %vm683, %v670, %v684
          %vm686 = vcmp.eq.s32.totalorder %v681, 2
          %v687 = vxor.u32 %v670, 2147483648
          %v688 = vsel %vm686, %v687, %v678
          %v689 = vsel %vm682, %v685, %v688
          %v690 = vsel %vm679, nan, %v689
          %691 = vst [vmem:[#allocation2] sm:$0xff] %v535
          %692 = vst [vmem:[#allocation2 + $0x8] sm:$0xff] %v690
        $region52: #{tpu_custom_call.1} parent=43 // pred_fallthru
          _
        %v693 = vld [vmem:[%s285] sm:$0xff]
        %v694 = vld [vmem:[%s285 + $0x8] sm:$0xff]
        %v695 = vld [vmem:[#allocation2] sm:$0xff]
        %v696 = vld [vmem:[#allocation2 + $0x8] sm:$0xff]
        %v697 = vadd.f32 %v693, %v695
        %v698 = vadd.f32 %v694, %v696
        %699 = vst [vmem:[%s326] sm:$0xff] %v697
        %700 = vst [vmem:[%s326 + $0x8] sm:$0xff] %v698
        %s701 = sand.u32 %s193, 1
        %s702 = scalar_lea.sflag [#allocation5], %s701
        %s703 = sand.u32 %s193, 1
        %s704 = smul.addr %s703, 16
        %s705 = scalar_lea.vmem [#allocation6], %s704
        // Predicated region
        $region53: #{tpu_custom_call.1} parent=43 // pred_check
          %p706 = pneg %p203
        $region54: #{tpu_custom_call.1} parent=43 // pred_check_branch
          %708 = sbr.rel (%p706) target = $region56
        $region55: #{tpu_custom_call.1} parent=43 // pred_region
          %710 = vsyncadd %s702, 0
          %s711 = smul.addr %s27, 2
          %s712 = smul.addr %s28, 2
          %s713 = sadd.s32 %s711, %s712
          %s714 = smul.addr %s713, 8
          %s715 = scalar_lea.hbm %s6, %s714
          %s717 = sshll.u32 %s705, 4
          %s718 = int_to_ptr.vmem [resolvable:$true] %s717
          %s719 = sshll.u32 %s715, 4
          %s720 = int_to_ptr.hbm [resolvable:$true] %s719
          %722 = dma.vmem_to_hbm [thread:$0]  %s718, 256, %s720, %s702
        $region56: #{tpu_custom_call.1} parent=43 // pred_fallthru
          _
      $region44: #{tpu_custom_call.1} parent=5 // pred_fallthru
        _
      %p723 = scmp.le.s32.totalorder 2, %s18
      // Predicated region
      $region57: #{tpu_custom_call.1} parent=5 // pred_check
        %p724 = pneg %p723
      $region58: #{tpu_custom_call.1} parent=5 // pred_check_branch
        %726 = sbr.rel (%p724) target = $region60
      $region59: #{tpu_custom_call.1} parent=5 // pred_region
        %s727 = ssub.s32 %s18, 2
        // Predicated region
        $region61: #{tpu_custom_call.1} parent=59 // pred_check
          %p728 = pneg %p209
        $region62: #{tpu_custom_call.1} parent=59 // pred_check_branch
          %730 = sbr.rel (%p728) target = $region64
        $region63: #{tpu_custom_call.1} parent=59 // pred_region
          %s731 = sand.u32 %s194, 1
          %s732 = scalar_lea.sflag [#allocation5], %s731
          %s733 = sand.u32 %s194, 1
          %s734 = smul.addr %s733, 16
          %s735 = scalar_lea.vmem [#allocation6], %s734
          %737 = dma.done %s732, 256
        $region64: #{tpu_custom_call.1} parent=59 // pred_fallthru
          _
      $region60: #{tpu_custom_call.1} parent=5 // pred_fallthru
        _
    $region6: #{tpu_custom_call.1} parent=1 // loop_footer
      %s22 = sadd.s32 1, %s18
    $region7: #{tpu_custom_call.1} parent=1 // loop_footer_branch
      %17 = sbr.rel target = $region3
    $region8: #{tpu_custom_call.1} parent=1 // loop_exit
      _
    %738 = vsyncpa [#allocation4], 1
    %s739 = scalar_lea.sflag [#allocation4], 1
    %740 = vsyncpa %s739, 1
    %741 = vsyncpa [#allocation5], 1
    %s742 = scalar_lea.sflag [#allocation5], 1
    %743 = vsyncpa %s742, 1

</llo_original>
